<compile_context>
chip_gen: v7x
topology: tpu7x:2x2x1
jax: 0.10.0
libtpu: 0.0.40
codegen_flags: <defaults>
</compile_context>

<pallas_src>
import functools

import jax
import jax.numpy as jnp
from jax.experimental import pallas as pl
from jax.experimental.pallas import tpu as pltpu

_LANES = 128
_SUBLANES = 8


def _round_up(x, m):
    return ((x + m - 1) // m) * m


def _cross_loss_kernel(a_ref, b_ref, o_ref, acc_ref, *,
                       loss_type, rows, block_rows, blocks_per_split,
                       need_mask):
    c = pl.program_id(0)          # parallel split (TensorCore shard on v7x)
    i = pl.program_id(1)          # reduction over row blocks

    @pl.when(i == 0)
    def _init():
        acc_ref[...] = jnp.zeros_like(acc_ref)

    a = a_ref[...].astype(jnp.float32)
    b = b_ref[...].astype(jnp.float32)
    d = a - b

    if need_mask:
        # Mask rows of the (partial) boundary block before accumulating:
        # Pallas fills out-of-range rows with unspecified data.
        blk = c * blocks_per_split + i
        row_ids = jax.lax.broadcasted_iota(jnp.int32, d.shape, 0) \
            + blk * block_rows
        d = jnp.where(row_ids < rows, d, 0.0)

    if loss_type == "l1":
        v = jnp.abs(d)
    else:  # 'l2'
        v = d * d

    # Pure VPU accumulate (independent per-vreg adds, no cross-lane work).
    acc_ref[...] += v

    @pl.when(i == pl.num_programs(1) - 1)
    def _finalize():
        # Collapse (block_rows, 128) -> (8, 128) partial sums with aligned
        # (8,128) slab adds; the final cross-lane sum happens in the wrapper.
        p = acc_ref[0:_SUBLANES, :]
        for k in range(1, block_rows // _SUBLANES):
            p = p + acc_ref[k * _SUBLANES:(k + 1) * _SUBLANES, :]
        o_ref[...] = p


def cross_loss(xhat_cross, xhat, loss_type="l1", block_rows=1024):
    """Mean L1 / L2 loss between two same-shaped tensors (Pallas TPU kernel)."""
    if loss_type not in ("l1", "l2"):
        raise ValueError("type must be 'l1' or 'l2'")
    if xhat_cross.shape != xhat.shape:
        raise ValueError("shapes must match")

    n = xhat_cross.size
    if n == 0:
        raise ValueError("cross_loss of empty tensors is undefined")

    a = jnp.ravel(xhat_cross)
    b = jnp.ravel(xhat)

    # Only if numel is not a lane multiple do we pad (rare; both sides get the
    # same zeros so the diff contributes nothing).  The common NCHW case is a
    # copy-free reshape.
    rem = n % _LANES
    if rem:
        pad = _LANES - rem
        a = jnp.pad(a, (0, pad))
        b = jnp.pad(b, (0, pad))

    rows = a.shape[0] // _LANES
    a2 = a.reshape(rows, _LANES)
    b2 = b.reshape(rows, _LANES)

    # Clamp the tile to the data; keep sublane count a multiple of 16 so bf16
    # packing stays aligned too.
    block_rows = max(16, min(int(block_rows), _round_up(rows, 16)))
    block_rows = _round_up(block_rows, 16)

    num_blocks = pl.cdiv(rows, block_rows)
    # 2-way TensorCore split on v7x when the block count divides evenly.
    nsplit = 2 if (num_blocks >= 2 and num_blocks % 2 == 0) else 1
    bps = num_blocks // nsplit
    need_mask = (rows % block_rows) != 0

    kernel = functools.partial(
        _cross_loss_kernel,
        loss_type=loss_type,
        rows=rows,
        block_rows=block_rows,
        blocks_per_split=bps,
        need_mask=need_mask,
    )

    in_bytes = 2 * a2.size * a2.dtype.itemsize
    cost = pl.CostEstimate(
        flops=3 * n,
        transcendentals=0,
        bytes_accessed=in_bytes + nsplit * _SUBLANES * _LANES * 4,
    )

    out = pl.pallas_call(
        kernel,
        out_shape=jax.ShapeDtypeStruct((nsplit * _SUBLANES, _LANES),
                                       jnp.float32),
        grid_spec=pltpu.PrefetchScalarGridSpec(
            num_scalar_prefetch=0,
            grid=(nsplit, bps),
            in_specs=[
                pl.BlockSpec((block_rows, _LANES),
                             lambda c, i: (c * bps + i, 0)),
                pl.BlockSpec((block_rows, _LANES),
                             lambda c, i: (c * bps + i, 0)),
            ],
            out_specs=pl.BlockSpec((_SUBLANES, _LANES), lambda c, i: (c, 0)),
            scratch_shapes=[pltpu.VMEM((block_rows, _LANES), jnp.float32)],
        ),
        compiler_params=pltpu.CompilerParams(
            dimension_semantics=("parallel", "arbitrary"),
        ),
        cost_estimate=cost,
    )(a2, b2)

    return jnp.sum(out) * jnp.float32(1.0 / n)


class CrossLoss:
    """JAX/Pallas port of the PyTorch CrossLoss module."""

    def __init__(self, type="l1"):
        if type not in ("l1", "l2"):
            raise ValueError("type must be 'l1' or 'l2'")
        self.type = type

    def __call__(self, xhat_cross, xhat):
        return cross_loss(xhat_cross, xhat, loss_type=self.type)


if __name__ == "__main__":
    key = jax.random.PRNGKey(0)
    k1, k2 = jax.random.split(key)
    # NCHW-shaped synthetic inputs consistent with an autoencoder output.
    xhat_cross = jax.random.normal(k1, (2, 4, 16, 16), dtype=jnp.float32)
    xhat = jax.random.normal(k2, (2, 4, 16, 16), dtype=jnp.float32)

    loss_l1 = CrossLoss("l1")(xhat_cross, xhat)
    loss_l2 = CrossLoss("l2")(xhat_cross, xhat)
    jax.block_until_ready((loss_l1, loss_l2))

    # Correctness check against a pure-JAX reference.
    ref_l1 = jnp.mean(jnp.abs(xhat_cross - xhat))
    ref_l2 = jnp.mean((xhat_cross - xhat) ** 2)
    assert jnp.allclose(loss_l1, ref_l1, rtol=1e-5, atol=1e-6), (loss_l1, ref_l1)
    assert jnp.allclose(loss_l2, ref_l2, rtol=1e-5, atol=1e-6), (loss_l2, ref_l2)

    # Also exercise a larger, block-masked, multi-block path.
    k3, k4 = jax.random.split(k1)
    big_a = jax.random.normal(k3, (4, 8, 72, 96), dtype=jnp.float32)
    big_b = jax.random.normal(k4, (4, 8, 72, 96), dtype=jnp.float32)
    big_l1 = cross_loss(big_a, big_b, "l1", block_rows=64)
    big_ref = jnp.mean(jnp.abs(big_a - big_b))
    jax.block_until_ready(big_l1)
    assert jnp.allclose(big_l1, big_ref, rtol=1e-5, atol=1e-6), (big_l1, big_ref)

    print("KERNEL_OK")
</pallas_src>

<mosaic_0001>
module attributes {stable_mosaic.version = 11 : i64} {
  func.func @_cross_loss_kernel(%arg0: i32, %arg1: i32, %arg2: memref<16x128xf32, #tpu.memory_space<vmem>>, %arg3: memref<16x128xf32, #tpu.memory_space<vmem>>, %arg4: memref<8x128xf32, #tpu.memory_space<vmem>>, %arg5: memref<16x128xf32, #tpu.memory_space<vmem>>) attributes {dimension_semantics = [#tpu.dimension_semantics<parallel>, #tpu.dimension_semantics<arbitrary>], iteration_bounds = array<i64: 1, 1>, scalar_prefetch = 0 : i64, scratch_operands = 1 : i64, tpu.core_type = #tpu.core_type<tc>, window_params = [{transform_indices = @transform_0, window_bounds = array<i64: 16, 128>}, {transform_indices = @transform_1, window_bounds = array<i64: 16, 128>}, {transform_indices = @transform_2, window_bounds = array<i64: 8, 128>}]} {
    %c0_i32 = arith.constant 0 : i32
    %0 = arith.cmpi eq, %arg1, %c0_i32 : i32
    %1 = arith.extui %0 : i1 to i32
    %c0_i32_0 = arith.constant 0 : i32
    %2 = arith.cmpi ne, %1, %c0_i32_0 : i32
    scf.if %2 {
      %cst = arith.constant 0.000000e+00 : f32
      %13 = vector.broadcast %cst : f32 to vector<16x128xf32>
      %c0_10 = arith.constant 0 : index
      %c0_11 = arith.constant 0 : index
      %14 = vector.load %arg5[%c0_10, %c0_11] : memref<16x128xf32, #tpu.memory_space<vmem>>, vector<16x128xf32>
      tpu.vector_store %arg5[%c0_10, %c0_11], %13 {strides = array<i32>} : memref<16x128xf32, #tpu.memory_space<vmem>>, vector<16x128xf32>,
    } else {
    }
    %c0 = arith.constant 0 : index
    %c0_1 = arith.constant 0 : index
    %3 = vector.load %arg2[%c0, %c0_1] : memref<16x128xf32, #tpu.memory_space<vmem>>, vector<16x128xf32>
    %c0_2 = arith.constant 0 : index
    %c0_3 = arith.constant 0 : index
    %4 = vector.load %arg3[%c0_2, %c0_3] : memref<16x128xf32, #tpu.memory_space<vmem>>, vector<16x128xf32>
    %5 = arith.subf %3, %4 : vector<16x128xf32>
    %6 = math.absf %5 : vector<16x128xf32>
    %c0_4 = arith.constant 0 : index
    %c0_5 = arith.constant 0 : index
    %7 = vector.load %arg5[%c0_4, %c0_5] : memref<16x128xf32, #tpu.memory_space<vmem>>, vector<16x128xf32>
    %8 = arith.addf %7, %6 : vector<16x128xf32>
    %c0_6 = arith.constant 0 : index
    %c0_7 = arith.constant 0 : index
    %9 = vector.load %arg5[%c0_6, %c0_7] : memref<16x128xf32, #tpu.memory_space<vmem>>, vector<16x128xf32>
    tpu.vector_store %arg5[%c0_6, %c0_7], %8 {strides = array<i32>} : memref<16x128xf32, #tpu.memory_space<vmem>>, vector<16x128xf32>,
    %c0_i32_8 = arith.constant 0 : i32
    %10 = arith.cmpi eq, %arg1, %c0_i32_8 : i32
    %11 = arith.extui %10 : i1 to i32
    %c0_i32_9 = arith.constant 0 : i32
    %12 = arith.cmpi ne, %11, %c0_i32_9 : i32
    scf.if %12 {
      %c0_10 = arith.constant 0 : index
      %c0_11 = arith.constant 0 : index
      %13 = vector.load %arg5[%c0_10, %c0_11] : memref<16x128xf32, #tpu.memory_space<vmem>>, vector<8x128xf32>
      %c8 = arith.constant 8 : index
      %c0_12 = arith.constant 0 : index
      %14 = vector.load %arg5[%c8, %c0_12] : memref<16x128xf32, #tpu.memory_space<vmem>>, vector<8x128xf32>
      %15 = arith.addf %13, %14 : vector<8x128xf32>
      %c0_13 = arith.constant 0 : index
      %c0_14 = arith.constant 0 : index
      %16 = vector.load %arg4[%c0_13, %c0_14] : memref<8x128xf32, #tpu.memory_space<vmem>>, vector<8x128xf32>
      tpu.vector_store %arg4[%c0_13, %c0_14], %15 {strides = array<i32>} : memref<8x128xf32, #tpu.memory_space<vmem>>, vector<8x128xf32>,
    } else {
    }
    return
  }
  func.func @transform_0(%arg0: i32, %arg1: i32) -> (i32, i32) {
    %c1_i32 = arith.constant 1 : i32
    %0 = arith.muli %arg0, %c1_i32 : i32
    %1 = arith.addi %0, %arg1 : i32
    %c0_i32 = arith.constant 0 : i32
    %c0_i32_0 = arith.constant 0 : i32
    return %1, %c0_i32 : i32, i32
  }
  func.func @transform_1(%arg0: i32, %arg1: i32) -> (i32, i32) {
    %c1_i32 = arith.constant 1 : i32
    %0 = arith.muli %arg0, %c1_i32 : i32
    %1 = arith.addi %0, %arg1 : i32
    %c0_i32 = arith.constant 0 : i32
    %c0_i32_0 = arith.constant 0 : i32
    return %1, %c0_i32 : i32, i32
  }
  func.func @transform_2(%arg0: i32, %arg1: i32) -> (i32, i32) {
    %c0_i32 = arith.constant 0 : i32
    %c0_i32_0 = arith.constant 0 : i32
    return %arg0, %c0_i32 : i32, i32
  }
}

</mosaic_0001>

<llo_original>
// kernel: tpu_custom_call.1
$region0: #{tpu_custom_call.1}
  #allocation0 [shape = 'u32[]', space=smem, size = 0x4, offset = 0x4, fixed_abs, tag = 'smem constant byte address 0x4 - core index']
  #allocation1 [shape = 'u32[144,128]{1,0:T(1,128)}', space=vmem, size = 0x12000, scoped, tag = 'internal scratch']
  #allocation2 [shape = 'f32[16,128]{1,0:T(8,128)}', space=vmem, size = 0x2000, scoped, tag = 'scratch operand']
  %s0 = inlined_call_operand.hbm [shape: f32[16,128], index: 0, kind: input, shape index: {}]
  %s1 = inlined_call_operand.hbm [shape: f32[16,128], index: 1, kind: input, shape index: {}]
  %s2 = inlined_call_operand.hbm [shape: f32[8,128], index: 2, kind: output, shape index: {}]
  %s3 = sld [smem:[#allocation0]]
  $region34: #{tpu_custom_call.1} parent=0
    _
  %s5 = ssub.s32 1, %s3
  %s6 = scalar_select 0, %s5, %s3
  $region1: #{tpu_custom_call.1} parent=0
    #allocation3 [shape = 'u8[8192]{0}', space=vmem, size = 0x2000, scoped, tag = 'input window, operand 0, single buffered']
    #allocation4 [shape = 's32[1]{0}', space=sflag, size = 0x4, scoped, tag = 'scoped memory for tpu_custom_call.1']
    #allocation5 [shape = 's32[1]{0}', space=sflag, size = 0x4, scoped, tag = 'scoped memory for tpu_custom_call.1']
    #allocation6 [shape = 'u8[8192]{0}', space=vmem, size = 0x2000, scoped, tag = 'input window, operand 1, single buffered']
    #allocation7 [shape = 's32[1]{0}', space=sflag, size = 0x4, scoped, tag = 'scoped memory for tpu_custom_call.1']
    #allocation8 [shape = 'u8[4096]{0}', space=vmem, size = 0x1000, scoped, tag = 'output window, operand 0, single buffered']
    %7 = vsyncpa [#allocation4], 0
    %8 = vsyncpa [#allocation7], 0
    %9 = vsyncpa [#allocation5], 0
    // Predicated region
    $region2: #{tpu_custom_call.1} parent=1 // pred_check
      _
    $region3: #{tpu_custom_call.1} parent=1 // pred_check_branch
      %11 = sbr.rel (0) target = $region5
    $region4: #{tpu_custom_call.1} parent=1 // pred_region
      %s12 = sadd.s32 0, 0
      %s13 = smul.u32 2, %s12
      %s15 = ssub.s32 256, 256
      %16 = vsyncadd [#allocation4], %s15
      %s17 = smul.addr %s13, 128
      %s18 = scalar_lea.hbm %s0, %s17
      %s19 = sshll.u32 [#allocation3], 4
      %s20 = int_to_ptr.vmem [resolvable:$true] %s19
      %25 = dma.hbm_to_vmem [thread:$0]  %s18, 256, %s20, [#allocation4], 128, 128, 8
    $region5: #{tpu_custom_call.1} parent=1 // pred_fallthru
      _
    // Predicated region
    $region6: #{tpu_custom_call.1} parent=1 // pred_check
      _
    $region7: #{tpu_custom_call.1} parent=1 // pred_check_branch
      %27 = sbr.rel (0) target = $region9
    $region8: #{tpu_custom_call.1} parent=1 // pred_region
      %s28 = sadd.s32 0, 0
      %s29 = smul.u32 2, %s28
      %s31 = ssub.s32 256, 256
      %32 = vsyncadd [#allocation7], %s31
      %s33 = smul.addr %s29, 128
      %s34 = scalar_lea.hbm %s1, %s33
      %s35 = sshll.u32 [#allocation6], 4
      %s36 = int_to_ptr.vmem [resolvable:$true] %s35
      %41 = dma.hbm_to_vmem [thread:$0]  %s34, 256, %s36, [#allocation7], 128, 128, 8
    $region9: #{tpu_custom_call.1} parent=1 // pred_fallthru
      _
    // Predicated region
    $region10: #{tpu_custom_call.1} parent=1 // pred_check
      _
    $region11: #{tpu_custom_call.1} parent=1 // pred_check_branch
      %43 = sbr.rel (0) target = $region13
    $region12: #{tpu_custom_call.1} parent=1 // pred_region
      %44 = dma.done [#allocation4], 256
    $region13: #{tpu_custom_call.1} parent=1 // pred_fallthru
      _
    // Predicated region
    $region14: #{tpu_custom_call.1} parent=1 // pred_check
      _
    $region15: #{tpu_custom_call.1} parent=1 // pred_check_branch
      %46 = sbr.rel (0) target = $region17
    $region16: #{tpu_custom_call.1} parent=1 // pred_region
      %47 = dma.done [#allocation7], 256
    $region17: #{tpu_custom_call.1} parent=1 // pred_fallthru
      _
    %s48 = sadd.s32 0, 0
    %s49 = smul.u32 2, %s48
    %s50 = sadd.s32 0, 0
    %s51 = smul.u32 2, %s50
    %p52 = scmp.eq.s32.totalorder 0, 0
    // Predicated region
    $region18: #{tpu_custom_call.1} parent=1 // pred_check
      %p53 = pneg %p52
    $region19: #{tpu_custom_call.1} parent=1 // pred_check_branch
      %55 = sbr.rel (%p53) target = $region21
    $region20: #{tpu_custom_call.1} parent=1 // pred_region
      %56 = vst [vmem:[#allocation2] sm:$0xff] 0.0
      %57 = vst [vmem:[#allocation2 + $0x8] sm:$0xff] 0.0
    $region21: #{tpu_custom_call.1} parent=1 // pred_fallthru
      _
    %v58 = vld [vmem:[#allocation3] sm:$0xff]
    %v59 = vld [vmem:[#allocation3 + $0x8] sm:$0xff]
    %v60 = vld [vmem:[#allocation6] sm:$0xff]
    %v61 = vld [vmem:[#allocation6 + $0x8] sm:$0xff]
    %v62 = vsub.f32 %v58, %v60
    %v63 = vsub.f32 %v59, %v61
    %v64 = vand.u32 2147483647, %v62
    %v65 = vand.u32 2147483647, %v63
    %v66 = vld [vmem:[#allocation2] sm:$0xff]
    %v67 = vld [vmem:[#allocation2 + $0x8] sm:$0xff]
    %v68 = vadd.f32 %v66, %v64
    %v69 = vadd.f32 %v67, %v65
    %70 = vst [vmem:[#allocation2] sm:$0xff] %v68
    %71 = vst [vmem:[#allocation2 + $0x8] sm:$0xff] %v69
    // Predicated region
    $region22: #{tpu_custom_call.1} parent=1 // pred_check
      %p72 = pneg %p52
    $region23: #{tpu_custom_call.1} parent=1 // pred_check_branch
      %74 = sbr.rel (%p72) target = $region25
    $region24: #{tpu_custom_call.1} parent=1 // pred_region
      %v75 = vld [vmem:[#allocation2] sm:$0xff]
      %v76 = vld [vmem:[#allocation2 + $0x8] sm:$0xff]
      %v77 = vadd.f32 %v75, %v76
      %78 = vst [vmem:[#allocation8] sm:$0xff] %v77
    $region25: #{tpu_custom_call.1} parent=1 // pred_fallthru
      _
    // Predicated region
    $region26: #{tpu_custom_call.1} parent=1 // pred_check
      _
    $region27: #{tpu_custom_call.1} parent=1 // pred_check_branch
      %80 = sbr.rel (0) target = $region29
    $region28: #{tpu_custom_call.1} parent=1 // pred_region
      %s82 = ssub.s32 128, 128
      %83 = vsyncadd [#allocation5], %s82
      %s85 = sshll.u32 [#allocation8], 4
      %s86 = int_to_ptr.vmem [resolvable:$true] %s85
      %88 = dma.vmem_to_hbm [thread:$0]  %s86, 128, %s2, [#allocation5]
    $region29: #{tpu_custom_call.1} parent=1 // pred_fallthru
      _
    // Predicated region
    $region30: #{tpu_custom_call.1} parent=1 // pred_check
      _
    $region31: #{tpu_custom_call.1} parent=1 // pred_check_branch
      %90 = sbr.rel (0) target = $region33
    $region32: #{tpu_custom_call.1} parent=1 // pred_region
      %91 = dma.done [#allocation5], 128
    $region33: #{tpu_custom_call.1} parent=1 // pred_fallthru
      _
    %92 = vsyncpa [#allocation4], 1
    %93 = vsyncpa [#allocation7], 1
    %94 = vsyncpa [#allocation5], 1

</llo_original>
